<compile_context>
chip_gen: v7x
topology: tpu7x:2x2x1
jax: 0.10.0
libtpu: 0.0.40
codegen_flags: <defaults>
</compile_context>

<pallas_src>
import functools

import jax
import jax.numpy as jnp
from jax.experimental import pallas as pl
from jax.experimental.pallas import tpu as pltpu


# Widest lane count we will try for the 2-D re-view (multiple of 128).
_MAX_LANES = 8192
_MIN_LANES = 128

# Below this many bytes, a Pallas launch costs more than XLA's fused op.
_SMALL_BYTES = 512 * 1024

# Target ~4 MiB per block: 2 buffers x (in + out) ~= 16 MiB resident.
_TARGET_BLOCK_BYTES = 4 << 20


def _mul_kernel(x_ref, o_ref, *, scale):
    # Pure VPU elementwise multiply over the whole VMEM tile; explicit cast
    # keeps the stored dtype == o_ref.dtype even if the multiply promotes.
    o_ref[...] = (x_ref[...] * scale).astype(o_ref.dtype)


def _sublane_multiple(dtype):
    # Rows per block must be a multiple of the sublane packing for the dtype.
    itemsize = jnp.dtype(dtype).itemsize
    return {4: 8, 2: 16, 1: 32}.get(itemsize, 8)


def _pick_lanes(total):
    """Largest multiple of 128 (<= _MAX_LANES) dividing `total`, else None."""
    for cand in range(_MAX_LANES, _MIN_LANES - 1, -_MIN_LANES):
        if total % cand == 0:
            return cand
    return None


def mul(x, scale, *, force_pallas=False):
    """Compute x * scale (matches torch `Mul.forward`) with a Pallas TPU kernel."""
    x = jnp.asarray(x)
    orig_shape = x.shape
    orig_dtype = x.dtype
    scale = float(scale)  # constructor constant in the module -> static scalar

    total = x.size
    itemsize = jnp.dtype(orig_dtype).itemsize

    # Tiny inputs: dispatch + pipeline prologue dwarfs moving a few KiB.
    if total == 0 or (not force_pallas and total * itemsize < _SMALL_BYTES):
        return (x * jnp.asarray(scale, dtype=orig_dtype)).astype(orig_dtype)

    # ---- Lane-dense 2-D view: flatten fully, re-view as (R, lanes). --------
    flat = x.reshape(-1)
    lanes = _pick_lanes(total)
    if lanes is None:
        # No 128-multiple divisor: pad the flat view (< lanes extra elements).
        lanes = 1024
        flat = jnp.pad(flat, (0, (-total) % lanes))
    padded_total = flat.size
    R = padded_total // lanes
    x2 = flat.reshape(R, lanes)

    # ---- Block-size selection (VMEM-budget driven). -------------------------
    sub = _sublane_multiple(orig_dtype)
    row_bytes = lanes * itemsize
    tr = max(sub, (_TARGET_BLOCK_BYTES // row_bytes) // sub * sub)
    if tr >= R:
        if R > sub:
            # Whole array fits one block: split into >= 2 blocks so both v7x
            # TensorCores get work on the "parallel" grid axis.
            half = (R + 1) // 2
            tr = max(sub, ((half + sub - 1) // sub) * sub)
            if tr >= R:
                tr = R
        else:
            tr = R  # single block; block == full dim satisfies the (8,128) rule

    grid = (pl.cdiv(R, tr),)
    block_bytes = tr * row_bytes
    # 2 pipeline buffers x (input + output) = 4x block, plus headroom; stay
    # well under v7x's 64 MiB physical VMEM.
    vmem_limit = int(min(max(6 * block_bytes, 16 << 20), 48 << 20))

    out2 = pl.pallas_call(
        functools.partial(_mul_kernel, scale=scale),
        out_shape=jax.ShapeDtypeStruct((R, lanes), orig_dtype),
        grid_spec=pltpu.PrefetchScalarGridSpec(
            num_scalar_prefetch=0,
            grid=grid,
            in_specs=[pl.BlockSpec((tr, lanes), lambda i: (i, 0))],
            out_specs=pl.BlockSpec((tr, lanes), lambda i: (i, 0)),
        ),
        compiler_params=pltpu.CompilerParams(
            dimension_semantics=("parallel",),
            vmem_limit_bytes=vmem_limit,
        ),
    )(x2)

    out_flat = out2.reshape(-1)
    if padded_total != total:
        out_flat = out_flat[:total]
    return out_flat.reshape(orig_shape)


if __name__ == "__main__":
    key = jax.random.PRNGKey(0)
    k1, k2, k3 = jax.random.split(key, 3)
    scale = 2.5  # deterministic "parameter" from __init__(scale)

    # 1) Small NCHW input consistent with the module's forward, forced through
    #    the Pallas kernel (single-block, lane-dense path).
    x_small = jax.random.normal(k1, (2, 4, 16, 16), dtype=jnp.float32)
    y_small = jax.block_until_ready(mul(x_small, scale, force_pallas=True))
    assert y_small.shape == x_small.shape and y_small.dtype == x_small.dtype
    assert jnp.allclose(y_small, x_small * scale, atol=1e-6, rtol=1e-6)

    # 2) Same small input through the XLA short-circuit path (size heuristic).
    y_small_x = jax.block_until_ready(mul(x_small, scale))
    assert jnp.allclose(y_small_x, x_small * scale, atol=1e-6, rtol=1e-6)

    # 3) Awkward shape (element count not a multiple of 128) forced through
    #    the kernel to exercise the pad/unpad fallback.
    x_odd = jax.random.normal(k2, (3, 5, 7, 11), dtype=jnp.float32)
    y_odd = jax.block_until_ready(mul(x_odd, scale, force_pallas=True))
    assert y_odd.shape == x_odd.shape and y_odd.dtype == x_odd.dtype
    assert jnp.allclose(y_odd, x_odd * scale, atol=1e-6, rtol=1e-6)

    # 4) Larger input that takes the default multi-block Pallas path
    #    (2 MiB f32 -> lanes=8192, R=64, >= 2 grid steps).
    x_big = jax.random.normal(k3, (8, 16, 64, 64), dtype=jnp.float32)
    y_big = jax.block_until_ready(mul(x_big, scale))
    assert y_big.shape == x_big.shape and y_big.dtype == x_big.dtype
    assert jnp.allclose(y_big, x_big * scale, atol=1e-6, rtol=1e-6)

    print("KERNEL_OK")
</pallas_src>

<mosaic_0001>
module attributes {stable_mosaic.version = 11 : i64} {
  func.func @_mul_kernel(%arg0: i32, %arg1: memref<1x2048xf32, #tpu.memory_space<vmem>>, %arg2: memref<1x2048xf32, #tpu.memory_space<vmem>>) attributes {dimension_semantics = [#tpu.dimension_semantics<parallel>], iteration_bounds = array<i64: 1>, scalar_prefetch = 0 : i64, scratch_operands = 0 : i64, tpu.core_type = #tpu.core_type<tc>, window_params = [{transform_indices = @transform_0, window_bounds = array<i64: 1, 2048>}, {transform_indices = @transform_1, window_bounds = array<i64: 1, 2048>}]} {
    %c0 = arith.constant 0 : index
    %c0_0 = arith.constant 0 : index
    %0 = vector.load %arg1[%c0, %c0_0] : memref<1x2048xf32, #tpu.memory_space<vmem>>, vector<1x2048xf32>
    %cst = arith.constant 2.500000e+00 : f32
    %1 = vector.broadcast %cst : f32 to vector<1x2048xf32>
    %2 = arith.mulf %0, %1 : vector<1x2048xf32>
    %c0_1 = arith.constant 0 : index
    %c0_2 = arith.constant 0 : index
    %3 = vector.load %arg2[%c0_1, %c0_2] : memref<1x2048xf32, #tpu.memory_space<vmem>>, vector<1x2048xf32>
    tpu.vector_store %arg2[%c0_1, %c0_2], %2 {strides = array<i32>} : memref<1x2048xf32, #tpu.memory_space<vmem>>, vector<1x2048xf32>,
    return
  }
  func.func @transform_0(%arg0: i32) -> (i32, i32) {
    %c0_i32 = arith.constant 0 : i32
    %c0_i32_0 = arith.constant 0 : i32
    return %arg0, %c0_i32 : i32, i32
  }
  func.func @transform_1(%arg0: i32) -> (i32, i32) {
    %c0_i32 = arith.constant 0 : i32
    %c0_i32_0 = arith.constant 0 : i32
    return %arg0, %c0_i32 : i32, i32
  }
}

</mosaic_0001>

<llo_original>
// kernel: tpu_custom_call.1
$region0: #{tpu_custom_call.1}
  #allocation0 [shape = 'u32[]', space=smem, size = 0x4, offset = 0x4, fixed_abs, tag = 'smem constant byte address 0x4 - core index']
  #allocation1 [shape = 'u32[144,128]{1,0:T(1,128)}', space=vmem, size = 0x12000, scoped, tag = 'internal scratch']
  %s0 = inlined_call_operand.hbm [shape: f32[1,2048], index: 0, kind: input, shape index: {}]
  %s1 = inlined_call_operand.hbm [shape: f32[1,2048], index: 1, kind: output, shape index: {}]
  %s2 = sld [smem:[#allocation0]]
  $region18: #{tpu_custom_call.1} parent=0
    _
  %s4 = ssub.s32 1, %s2
  %s5 = scalar_select 0, %s4, %s2
  $region1: #{tpu_custom_call.1} parent=0
    #allocation2 [shape = 'u8[8192]{0}', space=vmem, size = 0x2000, scoped, tag = 'input window, operand 0, single buffered']
    #allocation3 [shape = 's32[1]{0}', space=sflag, size = 0x4, scoped, tag = 'scoped memory for tpu_custom_call.1']
    #allocation4 [shape = 's32[1]{0}', space=sflag, size = 0x4, scoped, tag = 'scoped memory for tpu_custom_call.1']
    #allocation5 [shape = 'u8[8192]{0}', space=vmem, size = 0x2000, scoped, tag = 'output window, operand 0, single buffered']
    %6 = vsyncpa [#allocation3], 0
    %7 = vsyncpa [#allocation4], 0
    // Predicated region
    $region2: #{tpu_custom_call.1} parent=1 // pred_check
      _
    $region3: #{tpu_custom_call.1} parent=1 // pred_check_branch
      %9 = sbr.rel (0) target = $region5
    $region4: #{tpu_custom_call.1} parent=1 // pred_region
      %s11 = ssub.s32 256, 256
      %12 = vsyncadd [#allocation3], %s11
      %s14 = sshll.u32 [#allocation2], 4
      %s15 = int_to_ptr.vmem [resolvable:$true] %s14
      %17 = dma.hbm_to_vmem [thread:$0]  %s0, 256, %s15, [#allocation3]
    $region5: #{tpu_custom_call.1} parent=1 // pred_fallthru
      _
    // Predicated region
    $region6: #{tpu_custom_call.1} parent=1 // pred_check
      _
    $region7: #{tpu_custom_call.1} parent=1 // pred_check_branch
      %19 = sbr.rel (0) target = $region9
    $region8: #{tpu_custom_call.1} parent=1 // pred_region
      %20 = dma.done [#allocation3], 256
    $region9: #{tpu_custom_call.1} parent=1 // pred_fallthru
      _
    %v21 = vld [vmem:[#allocation2] sm:$0xff]
    %v22 = vld [vmem:[#allocation2 + $0x8] sm:$0xff]
    %v23 = vmul.f32 %v21, 2.5
    %v24 = vmul.f32 %v22, 2.5
    %25 = vst [vmem:[#allocation5] sm:$0xff] %v23
    %26 = vst [vmem:[#allocation5 + $0x8] sm:$0xff] %v24
    // Predicated region
    $region10: #{tpu_custom_call.1} parent=1 // pred_check
      _
    $region11: #{tpu_custom_call.1} parent=1 // pred_check_branch
      %28 = sbr.rel (0) target = $region13
    $region12: #{tpu_custom_call.1} parent=1 // pred_region
      %s30 = ssub.s32 256, 256
      %31 = vsyncadd [#allocation4], %s30
      %s33 = sshll.u32 [#allocation5], 4
      %s34 = int_to_ptr.vmem [resolvable:$true] %s33
      %36 = dma.vmem_to_hbm [thread:$0]  %s34, 256, %s1, [#allocation4]
    $region13: #{tpu_custom_call.1} parent=1 // pred_fallthru
      _
    // Predicated region
    $region14: #{tpu_custom_call.1} parent=1 // pred_check
      _
    $region15: #{tpu_custom_call.1} parent=1 // pred_check_branch
      %38 = sbr.rel (0) target = $region17
    $region16: #{tpu_custom_call.1} parent=1 // pred_region
      %39 = dma.done [#allocation4], 256
    $region17: #{tpu_custom_call.1} parent=1 // pred_fallthru
      _
    %40 = vsyncpa [#allocation3], 1
    %41 = vsyncpa [#allocation4], 1

</llo_original>
